<compile_context>
chip_gen: v6e
topology: v6e:2x2x1
jax: 0.10.0
libtpu: 0.0.40
codegen_flags: <defaults>
</compile_context>

<pallas_src>
import functools

import numpy as np
import jax
import jax.numpy as jnp
from jax import lax
from jax.experimental import pallas as pl
from jax.experimental.pallas import tpu as pltpu


def _round_up(x, m):
    return ((x + m - 1) // m) * m


def _coattention_kernel(inv_temperature, negative_slope, n1p,
                        nodes_ref, seg1_ref, seg2_ref,
                        w_kv_blk_ref, wo_ref, bo_ref, out_ref):
    f32 = jnp.float32
    NEG = jnp.float32(-1e30)

    dn_nt = (((1,), (1,)), ((), ()))    # (M,K) x (N,K) -> (M,N)  contract last dims
    dn_tn = (((0,), (0,)), ((), ()))    # (K,M) x (K,N) -> (M,N)  contract first dims

    nodes = nodes_ref[...]              # (Np, d)   stacked [node1 pad ; node2 pad]
    w_kv_blk = w_kv_blk_ref[...]        # (4d, d)   rows [wk; wv; wk; wv]
    wo = wo_ref[...]                    # (d_out_pad, d)  zero-padded out_proj weight
    bo = bo_ref[...]                    # (1, d_out_pad)  zero-padded out_proj bias

    Np, d = nodes.shape
    d2, d4 = 2 * d, 4 * d

    seg1 = seg1_ref[...]                # (Ep, 1) int32 (graph-1 segment ids, local)
    seg2 = seg2_ref[...]                # (Ep, 1) int32 (graph-2 segment ids, local)
    Ep = seg1.shape[0]

    row = lax.broadcasted_iota(jnp.int32, (Np, 1), 0)
    row_is_g1 = row < n1p                                           # (Np, 1)

    # ---- lane-dense fused key/value projection: kv2x = [k | v | k | v] ------
    kv2x = lax.dot_general(nodes, w_kv_blk, dn_nt,
                           preferred_element_type=f32)              # (Np, 4d)
    lane4 = lax.broadcasted_iota(jnp.int32, (Np, d4), 1)
    # block-diagonal [kv1 0 ; 0 kv2] built with a select (no concatenate):
    kv_blk = jnp.where((lane4 < d2) == row_is_g1, kv2x, 0.0)        # (Np, 4d)

    # ---- one-hot edge->node matrices (f32 only; global row indices) ---------
    col = lax.broadcasted_iota(jnp.int32, (Ep, Np), 1)
    S1 = (col == seg1).astype(f32)            # hits graph-1 rows  [0, n1p)
    S2 = (col == seg2 + n1p).astype(f32)      # hits graph-2 rows  [n1p, Np)
    S_cat = S1 + S2                           # columns are disjoint

    # ---- ONE MXU gather: g = [k1[seg1] | v1[seg1] | k2[seg2] | v2[seg2]] ----
    g = jnp.dot(S_cat, kv_blk, preferred_element_type=f32)          # (Ep, 4d)
    k1g = g[:, 0:d]
    k2g = g[:, d2:d2 + d]

    # translation = (node1_ctr * node2_ctr).sum(1)
    trans = jnp.sum(k1g * k2g, axis=1, keepdims=True)               # (Ep, 1)

    # ---- per-segment max for BOTH graphs in one masked reduce ---------------
    seg_max = jnp.max(jnp.where(S_cat != 0.0, trans, NEG),
                      axis=0, keepdims=True)                        # (1, Np)

    # gather-back of the max per edge & graph (MXU, 1 output lane each)
    lm1 = lax.dot_general(S1, seg_max, dn_nt, preferred_element_type=f32)
    lm2 = lax.dot_general(S2, seg_max, dn_nt, preferred_element_type=f32)
    e1 = jnp.exp((trans - lm1) * inv_temperature)                   # (Ep, 1)
    e2 = jnp.exp((trans - lm2) * inv_temperature)                   # (Ep, 1)

    # ---- deferred-normalization scatter: ONE lane-dense matmul per graph ----
    # payload lane 0 carries e itself (the softmax denominator); every other
    # lane carries e * g, so the v-lanes of the result are the unnormalized
    # messages.  Division by (seg_sum + eps) commutes with the segment sum.
    laneE = lax.broadcasted_iota(jnp.int32, (Ep, d4), 1)
    payload1 = jnp.where(laneE == 0, e1, e1 * g)                    # (Ep, 4d)
    payload2 = jnp.where(laneE == 0, e2, e2 * g)                    # (Ep, 4d)
    acc1 = lax.dot_general(S1, payload1, dn_tn, preferred_element_type=f32)
    acc2 = lax.dot_general(S2, payload2, dn_tn, preferred_element_type=f32)

    # graph-1 rows: num = sum(e1 * v2[seg2])  (lanes 3d:4d), den = sum(e1)
    # graph-2 rows: num = sum(e2 * v1[seg1])  (lanes  d:2d), den = sum(e2)
    num = jnp.where(row_is_g1, acc1[:, 3 * d:d4], acc2[:, d:d2])    # (Np, d)
    den = jnp.where(row_is_g1, acc1[:, 0:1], acc2[:, 0:1])          # (Np, 1)
    msg = num * pl.reciprocal(den + 1e-8, approx=False)             # (Np, d)

    # ---- fused out-projection + LeakyReLU, single lane-dense full store -----
    y = lax.dot_general(msg, wo, dn_nt, preferred_element_type=f32) + bo
    out_ref[...] = jnp.where(y > 0, y, negative_slope * y).astype(out_ref.dtype)


def prepare_kernel_params(params, d_in, d_out, n_head=1):
    """One-time (hoisted) weight prep: no per-call transposes / concats / pads."""
    d_out_pad = _round_up(d_out, 128)
    w_kv_blk = jnp.concatenate([params["wk"], params["wv"],
                                params["wk"], params["wv"]], axis=0)     # (4d, d)
    wo_pad = jnp.zeros((d_out_pad, d_in * n_head), jnp.float32).at[:d_out].set(params["wo"])
    bo_pad = jnp.zeros((1, d_out_pad), jnp.float32).at[0, :d_out].set(params["bo"])
    return {"w_kv_blk": w_kv_blk, "wo_pad": wo_pad, "bo_pad": bo_pad}


def _pick_vmem_limit_bytes():
    # v5e/v6e (128 MiB physical): raise the scoped limit toward ~100 MiB.
    # v7x (64 MiB physical): cap near 48 MiB to keep compiler-scratch headroom.
    try:
        cap = int(pltpu.get_tpu_info().vmem_capacity_bytes)
    except Exception:
        return 48 * 1024 * 1024
    return max(32 * 1024 * 1024, min(cap - 16 * 1024 * 1024, 100 * 1024 * 1024))


def coattention_forward(params, node1, seg_i1, idx_j1, node2, seg_i2, idx_j2,
                        *, d_in, d_out, n_head=1):
    assert n_head == 1  # TODO(synk): multi-head path not implemented.
    del idx_j1, idx_j2  # redundant for the per-segment max (see header).
    inv_temperature = float(1.0 / np.sqrt(d_in))

    n1, d = node1.shape
    n2, _ = node2.shape
    E = seg_i1.shape[0]

    # 8-row sublane alignment for both graph splits; edge padding uses the
    # out-of-range sentinel Np so padded one-hot rows are identically zero.
    n1p, n2p, Ep = _round_up(n1, 8), _round_up(n2, 8), _round_up(E, 8)
    Np = n1p + n2p
    d_out_pad = params["wo_pad"].shape[0]

    nodes = (jnp.zeros((Np, d), jnp.float32)
             .at[:n1].set(node1.astype(jnp.float32))
             .at[n1p:n1p + n2].set(node2.astype(jnp.float32)))
    seg1 = jnp.full((Ep, 1), Np, jnp.int32).at[:E, 0].set(seg_i1.astype(jnp.int32))
    seg2 = jnp.full((Ep, 1), Np, jnp.int32).at[:E, 0].set(seg_i2.astype(jnp.int32))

    inputs = (nodes, seg1, seg2,
              params["w_kv_blk"], params["wo_pad"], params["bo_pad"])

    flops = int(2 * Np * d * 4 * d            # kv projection
                + 2 * Ep * Np * 4 * d         # fused one-hot gather
                + 2 * 2 * Ep * Np             # logit-max gather-backs
                + 2 * 2 * Ep * Np * 4 * d     # deferred-norm scatters
                + 2 * Np * d * d_out_pad)     # fused out-projection
    bytes_accessed = int(sum(x.size * x.dtype.itemsize for x in inputs)
                         + Np * d_out_pad * 4)

    kernel = functools.partial(_coattention_kernel, inv_temperature, 0.01, n1p)
    vmem = pl.BlockSpec(memory_space=pltpu.MemorySpace.VMEM)
    out = pl.pallas_call(
        kernel,
        out_shape=jax.ShapeDtypeStruct((Np, d_out_pad), jnp.float32),
        in_specs=[vmem] * len(inputs),        # whole-array, single-buffered (no grid)
        out_specs=vmem,
        compiler_params=pltpu.CompilerParams(
            vmem_limit_bytes=_pick_vmem_limit_bytes()),
        cost_estimate=pl.CostEstimate(flops=flops, transcendentals=2 * Ep,
                                      bytes_accessed=bytes_accessed),
    )(*inputs)

    msg1 = out[:n1, :d_out]
    msg2 = out[n1p:n1p + n2, :d_out]
    return msg1, msg2


def init_params(key, d_in, d_out, n_head=1):
    k1, k2, k3, k4 = jax.random.split(key, 4)
    # xavier_normal_ for key/val proj weights, shape (d_in*n_head, d_in)
    std = float(np.sqrt(2.0 / (d_in + d_in * n_head)))
    wk = std * jax.random.normal(k1, (d_in * n_head, d_in), jnp.float32)
    wv = std * jax.random.normal(k2, (d_in * n_head, d_in), jnp.float32)
    # nn.Linear default init for out_proj
    bound = 1.0 / float(np.sqrt(d_in * n_head))
    wo = jax.random.uniform(k3, (d_out, d_in * n_head), jnp.float32, -bound, bound)
    bo = jax.random.uniform(k4, (d_out,), jnp.float32, -bound, bound)
    params = {"wk": wk, "wv": wv, "wo": wo, "bo": bo}
    params.update(prepare_kernel_params(params, d_in, d_out, n_head))
    return params


def _reference(params, node1, seg_i1, node2, seg_i2, temperature):
    k1 = node1 @ params["wk"].T
    k2 = node2 @ params["wk"].T
    v1 = node1 @ params["wv"].T
    v2 = node2 @ params["wv"].T
    n1c, n2c = k1[seg_i1], k2[seg_i2]
    n1n, n2n = v2[seg_i2], v1[seg_i1]
    trans = jnp.sum(n1c * n2c, axis=1)

    def seg_softmax(logit, seg, n):
        m = jax.ops.segment_max(logit, seg, num_segments=n)
        e = jnp.exp((logit - m[seg]) / temperature)
        s = jax.ops.segment_sum(e, seg, num_segments=n)
        return e / (s[seg] + 1e-8)

    p1 = seg_softmax(trans, seg_i1, node1.shape[0])
    p2 = seg_softmax(trans, seg_i2, node2.shape[0])
    m1 = jax.ops.segment_sum(p1[:, None] * n1n, seg_i1, num_segments=node1.shape[0])
    m2 = jax.ops.segment_sum(p2[:, None] * n2n, seg_i2, num_segments=node2.shape[0])

    def out_proj(x):
        y = x @ params["wo"].T + params["bo"]
        return jnp.where(y > 0, y, 0.01 * y)

    return out_proj(m1), out_proj(m2)


if __name__ == "__main__":
    d_in, d_out, n_head = 32, 32, 1
    n_seg1, n_seg2, E = 10, 7, 19        # deliberately non-8-aligned: exercises padding

    key = jax.random.PRNGKey(0)
    kp, kn1, kn2, ks1, ks2 = jax.random.split(key, 5)

    params = init_params(kp, d_in, d_out, n_head)
    node1 = jax.random.normal(kn1, (n_seg1, d_in), jnp.float32)
    node2 = jax.random.normal(kn2, (n_seg2, d_in), jnp.float32)
    seg_i1 = jax.random.randint(ks1, (E,), 0, n_seg1, jnp.int32)
    seg_i2 = jax.random.randint(ks2, (E,), 0, n_seg2, jnp.int32)

    # idx_j = position of each edge within its segment (as in the reference usage).
    def make_idx_j(seg, n):
        seg_np = np.asarray(seg)
        counts = np.zeros(n, dtype=np.int64)
        idx = np.zeros_like(seg_np)
        for e, s in enumerate(seg_np):
            idx[e] = counts[s]
            counts[s] += 1
        return jnp.asarray(idx, jnp.int32)

    idx_j1 = make_idx_j(seg_i1, n_seg1)
    idx_j2 = make_idx_j(seg_i2, n_seg2)

    msg1, msg2 = coattention_forward(params, node1, seg_i1, idx_j1,
                                     node2, seg_i2, idx_j2,
                                     d_in=d_in, d_out=d_out, n_head=n_head)
    jax.block_until_ready((msg1, msg2))

    ref1, ref2 = _reference(params, node1, seg_i1, node2, seg_i2,
                            float(np.sqrt(d_in)))
    np.testing.assert_allclose(np.asarray(msg1), np.asarray(ref1),
                               rtol=1e-5, atol=1e-5)
    np.testing.assert_allclose(np.asarray(msg2), np.asarray(ref2),
                               rtol=1e-5, atol=1e-5)

    print("KERNEL_OK")
</pallas_src>

<mosaic_0001>
module attributes {stable_mosaic.version = 11 : i64} {
  func.func @_coattention_kernel(%arg0: memref<24x32xf32, #tpu.memory_space<vmem>>, %arg1: memref<24x1xi32, #tpu.memory_space<vmem>>, %arg2: memref<24x1xi32, #tpu.memory_space<vmem>>, %arg3: memref<128x32xf32, #tpu.memory_space<vmem>>, %arg4: memref<128x32xf32, #tpu.memory_space<vmem>>, %arg5: memref<1x128xf32, #tpu.memory_space<vmem>>, %arg6: memref<24x128xf32, #tpu.memory_space<vmem>>) attributes {dimension_semantics = [], scalar_prefetch = 0 : i64, scratch_operands = 0 : i64, tpu.core_type = #tpu.core_type<tc>} {
    %c0 = arith.constant 0 : index
    %c0_0 = arith.constant 0 : index
    %0 = vector.load %arg0[%c0, %c0_0] : memref<24x32xf32, #tpu.memory_space<vmem>>, vector<24x32xf32>
    %c0_1 = arith.constant 0 : index
    %c0_2 = arith.constant 0 : index
    %1 = vector.load %arg3[%c0_1, %c0_2] : memref<128x32xf32, #tpu.memory_space<vmem>>, vector<128x32xf32>
    %c0_3 = arith.constant 0 : index
    %c0_4 = arith.constant 0 : index
    %2 = vector.load %arg4[%c0_3, %c0_4] : memref<128x32xf32, #tpu.memory_space<vmem>>, vector<128x32xf32>
    %c0_5 = arith.constant 0 : index
    %c0_6 = arith.constant 0 : index
    %3 = vector.load %arg5[%c0_5, %c0_6] : memref<1x128xf32, #tpu.memory_space<vmem>>, vector<1x128xf32>
    %c0_7 = arith.constant 0 : index
    %c0_8 = arith.constant 0 : index
    %4 = vector.load %arg1[%c0_7, %c0_8] : memref<24x1xi32, #tpu.memory_space<vmem>>, vector<24x1xi32>
    %c0_9 = arith.constant 0 : index
    %c0_10 = arith.constant 0 : index
    %5 = vector.load %arg2[%c0_9, %c0_10] : memref<24x1xi32, #tpu.memory_space<vmem>>, vector<24x1xi32>
    %6 = tpu.iota {dimensions = array<i32: 0>} : vector<24x1xi32>
    %c16_i32 = arith.constant 16 : i32
    %7 = vector.broadcast %c16_i32 : i32 to vector<24x1xi32>
    %8 = arith.cmpi slt, %6, %7 : vector<24x1xi32>
    %cst = arith.constant dense<0.000000e+00> : vector<24x128xf32>
    %9 = tpu.matmul %0, %1, %cst {dimension_numbers = #tpu.dot_dimension_numbers<[1], [1], [0], [0], [0, 0, 1, 0], [], []>} : vector<24x32xf32>, vector<128x32xf32>, vector<24x128xf32> -> vector<24x128xf32>
    %10 = tpu.iota {dimensions = array<i32: 1>} : vector<24x128xi32>
    %c64_i32 = arith.constant 64 : i32
    %11 = vector.broadcast %c64_i32 : i32 to vector<24x128xi32>
    %12 = arith.cmpi slt, %10, %11 : vector<24x128xi32>
    %13 = vector.broadcast %8 : vector<24x1xi1> to vector<24x128xi1>
    %14 = vector.broadcast %13 : vector<24x128xi1> to vector<24x128xi1>
    %15 = arith.xori %12, %14 : vector<24x128xi1>
    %cst_11 = arith.constant dense<true> : vector<24x128xi1>
    %16 = arith.xori %15, %cst_11 : vector<24x128xi1>
    %cst_12 = arith.constant 0.000000e+00 : f32
    %17 = vector.broadcast %cst_12 : f32 to vector<24x128xf32>
    %18 = arith.select %16, %9, %17 : vector<24x128xi1>, vector<24x128xf32>
    %19 = tpu.iota {dimensions = array<i32: 1>} : vector<24x24xi32>
    %20 = vector.broadcast %4 : vector<24x1xi32> to vector<24x24xi32>
    %21 = arith.cmpi eq, %19, %20 : vector<24x24xi32>
    %22 = arith.extui %21 : vector<24x24xi1> to vector<24x24xi32>
    %23 = arith.sitofp %22 : vector<24x24xi32> to vector<24x24xf32>
    %c16_i32_13 = arith.constant 16 : i32
    %24 = vector.broadcast %c16_i32_13 : i32 to vector<24x1xi32>
    %25 = arith.addi %5, %24 : vector<24x1xi32>
    %26 = vector.broadcast %25 : vector<24x1xi32> to vector<24x24xi32>
    %27 = arith.cmpi eq, %19, %26 : vector<24x24xi32>
    %28 = arith.extui %27 : vector<24x24xi1> to vector<24x24xi32>
    %29 = arith.sitofp %28 : vector<24x24xi32> to vector<24x24xf32>
    %30 = arith.addf %23, %29 : vector<24x24xf32>
    %cst_14 = arith.constant dense<0.000000e+00> : vector<24x128xf32>
    %31 = tpu.matmul %30, %18, %cst_14 {dimension_numbers = #tpu.dot_dimension_numbers<[1], [0], [0], [1], [0, 0, 1, 1], [], []>} : vector<24x24xf32>, vector<24x128xf32>, vector<24x128xf32> -> vector<24x128xf32>
    %32 = vector.extract_strided_slice %31 {offsets = [0, 0], sizes = [24, 32], strides = [1, 1]} : vector<24x128xf32> to vector<24x32xf32>
    %33 = vector.extract_strided_slice %31 {offsets = [0, 64], sizes = [24, 32], strides = [1, 1]} : vector<24x128xf32> to vector<24x32xf32>
    %34 = arith.mulf %32, %33 : vector<24x32xf32>
    %cst_15 = arith.constant dense<0.000000e+00> : vector<24xf32>
    %35 = vector.multi_reduction <add>, %34, %cst_15 [1] : vector<24x32xf32> to vector<24xf32>
    %36 = vector.shape_cast %35 : vector<24xf32> to vector<24x1xf32>
    %cst_16 = arith.constant 0.000000e+00 : f32
    %37 = vector.broadcast %cst_16 : f32 to vector<24x24xf32>
    %38 = arith.cmpf one, %30, %37 : vector<24x24xf32>
    %cst_17 = arith.constant -1.000000e+30 : f32
    %39 = vector.shape_cast %36 : vector<24x1xf32> to vector<24x1xf32>
    %40 = vector.broadcast %39 : vector<24x1xf32> to vector<24x24xf32>
    %41 = vector.broadcast %cst_17 : f32 to vector<24x24xf32>
    %42 = arith.select %38, %40, %41 : vector<24x24xi1>, vector<24x24xf32>
    %cst_18 = arith.constant dense<0xFF800000> : vector<24xf32>
    %43 = vector.multi_reduction <maximumf>, %42, %cst_18 [0] : vector<24x24xf32> to vector<24xf32>
    %44 = vector.shape_cast %43 : vector<24xf32> to vector<1x24xf32>
    %cst_19 = arith.constant dense<0.000000e+00> : vector<24x1xf32>
    %45 = tpu.matmul %23, %44, %cst_19 {dimension_numbers = #tpu.dot_dimension_numbers<[1], [1], [0], [0], [0, 0, 1, 0], [], []>} : vector<24x24xf32>, vector<1x24xf32>, vector<24x1xf32> -> vector<24x1xf32>
    %cst_20 = arith.constant dense<0.000000e+00> : vector<24x1xf32>
    %46 = tpu.matmul %29, %44, %cst_20 {dimension_numbers = #tpu.dot_dimension_numbers<[1], [1], [0], [0], [0, 0, 1, 0], [], []>} : vector<24x24xf32>, vector<1x24xf32>, vector<24x1xf32> -> vector<24x1xf32>
    %47 = arith.subf %36, %45 : vector<24x1xf32>
    %cst_21 = arith.constant 0.176776692 : f32
    %48 = vector.broadcast %cst_21 : f32 to vector<24x1xf32>
    %49 = arith.mulf %47, %48 : vector<24x1xf32>
    %50 = math.exp %49 : vector<24x1xf32>
    %51 = arith.subf %36, %46 : vector<24x1xf32>
    %cst_22 = arith.constant 0.176776692 : f32
    %52 = vector.broadcast %cst_22 : f32 to vector<24x1xf32>
    %53 = arith.mulf %51, %52 : vector<24x1xf32>
    %54 = math.exp %53 : vector<24x1xf32>
    %55 = tpu.iota {dimensions = array<i32: 1>} : vector<24x128xi32>
    %c0_i32 = arith.constant 0 : i32
    %56 = vector.broadcast %c0_i32 : i32 to vector<24x128xi32>
    %57 = arith.cmpi eq, %55, %56 : vector<24x128xi32>
    %58 = vector.broadcast %50 : vector<24x1xf32> to vector<24x128xf32>
    %59 = arith.mulf %58, %31 : vector<24x128xf32>
    %60 = vector.shape_cast %50 : vector<24x1xf32> to vector<24x1xf32>
    %61 = vector.broadcast %60 : vector<24x1xf32> to vector<24x128xf32>
    %62 = arith.select %57, %61, %59 : vector<24x128xi1>, vector<24x128xf32>
    %c0_i32_23 = arith.constant 0 : i32
    %63 = vector.broadcast %c0_i32_23 : i32 to vector<24x128xi32>
    %64 = arith.cmpi eq, %55, %63 : vector<24x128xi32>
    %65 = vector.broadcast %54 : vector<24x1xf32> to vector<24x128xf32>
    %66 = arith.mulf %65, %31 : vector<24x128xf32>
    %67 = vector.shape_cast %54 : vector<24x1xf32> to vector<24x1xf32>
    %68 = vector.broadcast %67 : vector<24x1xf32> to vector<24x128xf32>
    %69 = arith.select %64, %68, %66 : vector<24x128xi1>, vector<24x128xf32>
    %cst_24 = arith.constant dense<0.000000e+00> : vector<24x128xf32>
    %70 = tpu.matmul %23, %62, %cst_24 {dimension_numbers = #tpu.dot_dimension_numbers<[0], [0], [1], [1], [0, 1, 1, 1], [], []>} : vector<24x24xf32>, vector<24x128xf32>, vector<24x128xf32> -> vector<24x128xf32>
    %cst_25 = arith.constant dense<0.000000e+00> : vector<24x128xf32>
    %71 = tpu.matmul %29, %69, %cst_25 {dimension_numbers = #tpu.dot_dimension_numbers<[0], [0], [1], [1], [0, 1, 1, 1], [], []>} : vector<24x24xf32>, vector<24x128xf32>, vector<24x128xf32> -> vector<24x128xf32>
    %72 = vector.extract_strided_slice %70 {offsets = [0, 96], sizes = [24, 32], strides = [1, 1]} : vector<24x128xf32> to vector<24x32xf32>
    %73 = vector.extract_strided_slice %71 {offsets = [0, 32], sizes = [24, 32], strides = [1, 1]} : vector<24x128xf32> to vector<24x32xf32>
    %74 = vector.shape_cast %8 : vector<24x1xi1> to vector<24x1xi1>
    %75 = vector.broadcast %74 : vector<24x1xi1> to vector<24x32xi1>
    %76 = arith.select %75, %72, %73 : vector<24x32xi1>, vector<24x32xf32>
    %77 = vector.extract_strided_slice %70 {offsets = [0, 0], sizes = [24, 1], strides = [1, 1]} : vector<24x128xf32> to vector<24x1xf32>
    %78 = vector.extract_strided_slice %71 {offsets = [0, 0], sizes = [24, 1], strides = [1, 1]} : vector<24x128xf32> to vector<24x1xf32>
    %79 = arith.select %8, %77, %78 : vector<24x1xi1>, vector<24x1xf32>
    %cst_26 = arith.constant 9.99999993E-9 : f32
    %80 = vector.broadcast %cst_26 : f32 to vector<24x1xf32>
    %81 = arith.addf %79, %80 : vector<24x1xf32>
    %82 = tpu.reciprocal %81 : vector<24x1xf32> -> vector<24x1xf32>
    %83 = vector.broadcast %82 : vector<24x1xf32> to vector<24x32xf32>
    %84 = arith.mulf %76, %83 : vector<24x32xf32>
    %cst_27 = arith.constant dense<0.000000e+00> : vector<24x128xf32>
    %85 = tpu.matmul %84, %2, %cst_27 {dimension_numbers = #tpu.dot_dimension_numbers<[1], [1], [0], [0], [0, 0, 1, 0], [], []>} : vector<24x32xf32>, vector<128x32xf32>, vector<24x128xf32> -> vector<24x128xf32>
    %86 = vector.broadcast %3 : vector<1x128xf32> to vector<24x128xf32>
    %87 = arith.addf %85, %86 : vector<24x128xf32>
    %cst_28 = arith.constant 0.000000e+00 : f32
    %88 = vector.broadcast %cst_28 : f32 to vector<24x128xf32>
    %89 = arith.cmpf ogt, %87, %88 : vector<24x128xf32>
    %cst_29 = arith.constant 0.00999999977 : f32
    %90 = vector.broadcast %cst_29 : f32 to vector<24x128xf32>
    %91 = arith.mulf %90, %87 : vector<24x128xf32>
    %92 = arith.select %89, %87, %91 : vector<24x128xi1>, vector<24x128xf32>
    %c0_30 = arith.constant 0 : index
    %c0_31 = arith.constant 0 : index
    %93 = vector.load %arg6[%c0_30, %c0_31] : memref<24x128xf32, #tpu.memory_space<vmem>>, vector<24x128xf32>
    tpu.vector_store %arg6[%c0_30, %c0_31], %92 {strides = array<i32>} : memref<24x128xf32, #tpu.memory_space<vmem>>, vector<24x128xf32>,
    return
  }
}

</mosaic_0001>

<llo_original>
// kernel: tpu_custom_call.1
$region0: #{tpu_custom_call.1}
  #allocation0 [shape = 'u32[]', space=smem, size = 0x4, offset = 0x4, fixed_abs, tag = 'smem constant byte address 0x4 - core index']
  #allocation1 [shape = 'u32[144,128]{1,0:T(1,128)}', space=vmem, size = 0x12000, scoped, tag = 'internal scratch']
  %s0 = inlined_call_operand.vmem [shape: f32[24,32], index: 0, kind: input, shape index: {}]
  %s1 = inlined_call_operand.vmem [shape: s32[24,1], index: 1, kind: input, shape index: {}]
  %s2 = inlined_call_operand.vmem [shape: s32[24,1], index: 2, kind: input, shape index: {}]
  %s3 = inlined_call_operand.vmem [shape: f32[128,32], index: 3, kind: input, shape index: {}]
  %s4 = inlined_call_operand.vmem [shape: f32[128,32], index: 4, kind: input, shape index: {}]
  %s5 = inlined_call_operand.vmem [shape: f32[1,128], index: 5, kind: input, shape index: {}]
  %s6 = inlined_call_operand.hbm [shape: f32[24,128], index: 6, kind: output, shape index: {}]
  %s7 = sld [smem:[#allocation0]]
  $region34: #{tpu_custom_call.1} parent=0
    _
  %s9 = ssub.s32 1, %s7
  %s10 = scalar_select 0, %s9, %s7
  $region1: #{tpu_custom_call.1} parent=0
    #allocation2 [shape = 'u8[12288]{0}', space=vmem, size = 0x3000, scoped, tag = 'output window, operand 0, single buffered']
    #allocation3 [shape = 's32[1]{0}', space=sflag, size = 0x4, scoped, tag = 'scoped memory for tpu_custom_call.1']
    %11 = vsyncpa [#allocation3], 0
    // Predicated region
    $region2: #{tpu_custom_call.1} parent=1 // pred_check
      _
    $region3: #{tpu_custom_call.1} parent=1 // pred_check_branch
      %13 = sbr.rel (0) target = $region5
    $region4: #{tpu_custom_call.1} parent=1 // pred_region
      _
    $region5: #{tpu_custom_call.1} parent=1 // pred_fallthru
      _
    // Predicated region
    $region6: #{tpu_custom_call.1} parent=1 // pred_check
      _
    $region7: #{tpu_custom_call.1} parent=1 // pred_check_branch
      %15 = sbr.rel (0) target = $region9
    $region8: #{tpu_custom_call.1} parent=1 // pred_region
      _
    $region9: #{tpu_custom_call.1} parent=1 // pred_fallthru
      _
    // Predicated region
    $region10: #{tpu_custom_call.1} parent=1 // pred_check
      _
    $region11: #{tpu_custom_call.1} parent=1 // pred_check_branch
      %17 = sbr.rel (0) target = $region13
    $region12: #{tpu_custom_call.1} parent=1 // pred_region
      _
    $region13: #{tpu_custom_call.1} parent=1 // pred_fallthru
      _
    // Predicated region
    $region14: #{tpu_custom_call.1} parent=1 // pred_check
      _
    $region15: #{tpu_custom_call.1} parent=1 // pred_check_branch
      %19 = sbr.rel (0) target = $region17
    $region16: #{tpu_custom_call.1} parent=1 // pred_region
      _
    $region17: #{tpu_custom_call.1} parent=1 // pred_fallthru
      _
    // Predicated region
    $region18: #{tpu_custom_call.1} parent=1 // pred_check
      _
    $region19: #{tpu_custom_call.1} parent=1 // pred_check_branch
      %21 = sbr.rel (0) target = $region21
    $region20: #{tpu_custom_call.1} parent=1 // pred_region
      _
    $region21: #{tpu_custom_call.1} parent=1 // pred_fallthru
      _
    // Predicated region
    $region22: #{tpu_custom_call.1} parent=1 // pred_check
      _
    $region23: #{tpu_custom_call.1} parent=1 // pred_check_branch
      %23 = sbr.rel (0) target = $region25
    $region24: #{tpu_custom_call.1} parent=1 // pred_region
      _
    $region25: #{tpu_custom_call.1} parent=1 // pred_fallthru
      _
    %v24 = vld [vmem:[%s0] sm:$0xff]
    %v25 = vld [vmem:[%s0 + $0x8] sm:$0xff]
    %v26 = vld [vmem:[%s0 + $0x10] sm:$0xff]
    %v27 = vld [vmem:[%s3] sm:$0xff]
    %v28 = vld [vmem:[%s3 + $0x8] sm:$0xff]
    %v29 = vld [vmem:[%s3 + $0x10] sm:$0xff]
    %v30 = vld [vmem:[%s3 + $0x18] sm:$0xff]
    %v31 = vld [vmem:[%s3 + $0x20] sm:$0xff]
    %v32 = vld [vmem:[%s3 + $0x28] sm:$0xff]
    %v33 = vld [vmem:[%s3 + $0x30] sm:$0xff]
    %v34 = vld [vmem:[%s3 + $0x38] sm:$0xff]
    %v35 = vld [vmem:[%s3 + $0x40] sm:$0xff]
    %v36 = vld [vmem:[%s3 + $0x48] sm:$0xff]
    %v37 = vld [vmem:[%s3 + $0x50] sm:$0xff]
    %v38 = vld [vmem:[%s3 + $0x58] sm:$0xff]
    %v39 = vld [vmem:[%s3 + $0x60] sm:$0xff]
    %v40 = vld [vmem:[%s3 + $0x68] sm:$0xff]
    %v41 = vld [vmem:[%s3 + $0x70] sm:$0xff]
    %v42 = vld [vmem:[%s3 + $0x78] sm:$0xff]
    %v43 = vld [vmem:[%s4] sm:$0xff]
    %v44 = vld [vmem:[%s4 + $0x8] sm:$0xff]
    %v45 = vld [vmem:[%s4 + $0x10] sm:$0xff]
    %v46 = vld [vmem:[%s4 + $0x18] sm:$0xff]
    %v47 = vld [vmem:[%s4 + $0x20] sm:$0xff]
    %v48 = vld [vmem:[%s4 + $0x28] sm:$0xff]
    %v49 = vld [vmem:[%s4 + $0x30] sm:$0xff]
    %v50 = vld [vmem:[%s4 + $0x38] sm:$0xff]
    %v51 = vld [vmem:[%s4 + $0x40] sm:$0xff]
    %v52 = vld [vmem:[%s4 + $0x48] sm:$0xff]
    %v53 = vld [vmem:[%s4 + $0x50] sm:$0xff]
    %v54 = vld [vmem:[%s4 + $0x58] sm:$0xff]
    %v55 = vld [vmem:[%s4 + $0x60] sm:$0xff]
    %v56 = vld [vmem:[%s4 + $0x68] sm:$0xff]
    %v57 = vld [vmem:[%s4 + $0x70] sm:$0xff]
    %v58 = vld [vmem:[%s4 + $0x78] sm:$0xff]
    %v59 = vld [vmem:[%s5] sm:$0x1]
    %v60 = vld [vmem:[%s1] sm:$0xff]
    %v61 = vld [vmem:[%s1 + $0x8] sm:$0xff]
    %v62 = vld [vmem:[%s1 + $0x10] sm:$0xff]
    %v63 = vld [vmem:[%s2] sm:$0xff]
    %v64 = vld [vmem:[%s2 + $0x8] sm:$0xff]
    %v65 = vld [vmem:[%s2 + $0x10] sm:$0xff]
    %v66 = vlaneseq
    %v67 = vshrl.u32 %v66, 7
    %v68 = vadd.s32 %v67, 8
    %v69 = vadd.s32 %v67, 16
    %vm70 = vcmp.lt.s32.totalorder %v67, 16
    %vm71 = vcmp.lt.s32.totalorder %v68, 16
    %vm72 = vcmp.lt.s32.totalorder %v69, 16
    %vm73 = vcmask 261120
    %v75 = vsel %vm73, %v24, 0
    %v78 = vsel %vm73, %v25, 0
    %v81 = vsel %vm73, %v26, 0
    %v84 = vsel %vm73, %v27, 0
    %v87 = vsel %vm73, %v28, 0
    %v90 = vsel %vm73, %v29, 0
    %v93 = vsel %vm73, %v30, 0
    %v96 = vsel %vm73, %v31, 0
    %v99 = vsel %vm73, %v32, 0
    %v102 = vsel %vm73, %v33, 0
    %v105 = vsel %vm73, %v34, 0
    %v108 = vsel %vm73, %v35, 0
    %v111 = vsel %vm73, %v36, 0
    %v114 = vsel %vm73, %v37, 0
    %v117 = vsel %vm73, %v38, 0
    %v120 = vsel %vm73, %v39, 0
    %v123 = vsel %vm73, %v40, 0
    %v126 = vsel %vm73, %v41, 0
    %v129 = vsel %vm73, %v42, 0
    %131 = vmatprep.subr.mxu0 0.0
    %132 = vmatpush1.xpose.msra.mxu0 %v129
    %133 = vmatprep.subr.mxu0 0.0
    %134 = vmatpush1.xpose.msra.mxu0 %v126
    %135 = vmatprep.subr.mxu0 0.0
    %136 = vmatpush1.xpose.msra.mxu0 %v123
    %137 = vmatprep.subr.mxu0 0.0
    %138 = vmatpush1.xpose.msra.mxu0 %v120
    %139 = vmatprep.subr.mxu0 0.0
    %140 = vmatpush1.xpose.msra.mxu0 %v117
    %141 = vmatprep.subr.mxu0 0.0
    %142 = vmatpush1.xpose.msra.mxu0 %v114
    %143 = vmatprep.subr.mxu0 0.0
    %144 = vmatpush1.xpose.msra.mxu0 %v111
    %145 = vmatprep.subr.mxu0 0.0
    %146 = vmatpush1.xpose.msra.mxu0 %v108
    %147 = vmatprep.subr.mxu0 0.0
    %148 = vmatpush1.xpose.msra.mxu0 %v105
    %149 = vmatprep.subr.mxu0 0.0
    %150 = vmatpush1.xpose.msra.mxu0 %v102
    %151 = vmatprep.subr.mxu0 0.0
    %152 = vmatpush1.xpose.msra.mxu0 %v99
    %153 = vmatprep.subr.mxu0 0.0
    %154 = vmatpush1.xpose.msra.mxu0 %v96
    %155 = vmatprep.subr.mxu0 0.0
    %156 = vmatpush1.xpose.msra.mxu0 %v93
    %157 = vmatprep.subr.mxu0 0.0
    %158 = vmatpush1.xpose.msra.mxu0 %v90
    %159 = vmatprep.subr.mxu0 0.0
    %160 = vmatpush1.xpose.msra.mxu0 %v87
    %161 = vmatprep.subr.mxu0 0.0
    %162 = vmatpush1.xpose.msra.mxu0 %v84
    %163 = vmatprep.subr.mxu0 0.0
    %164 = vmatpush2.xpose.msra.mxu0 0.0
    %165 = vmatprep.subr.mxu0 0.0
    %166 = vmatpush2.xpose.msra.mxu0 0.0
    %167 = vmatprep.subr.mxu0 0.0
    %168 = vmatpush2.xpose.msra.mxu0 0.0
    %169 = vmatprep.subr.mxu0 0.0
    %170 = vmatpush2.xpose.msra.mxu0 0.0
    %171 = vmatprep.subr.mxu0 0.0
    %172 = vmatpush2.xpose.msra.mxu0 0.0
    %173 = vmatprep.subr.mxu0 0.0
    %174 = vmatpush2.xpose.msra.mxu0 0.0
    %175 = vmatprep.subr.mxu0 0.0
    %176 = vmatpush2.xpose.msra.mxu0 0.0
    %177 = vmatprep.subr.mxu0 0.0
    %178 = vmatpush2.xpose.msra.mxu0 0.0
    %179 = vmatprep.subr.mxu0 0.0
    %180 = vmatpush2.xpose.msra.mxu0 0.0
    %181 = vmatprep.subr.mxu0 0.0
    %182 = vmatpush2.xpose.msra.mxu0 0.0
    %183 = vmatprep.subr.mxu0 0.0
    %184 = vmatpush2.xpose.msra.mxu0 0.0
    %185 = vmatprep.subr.mxu0 0.0
    %186 = vmatpush2.xpose.msra.mxu0 0.0
    %187 = vmatprep.subr.mxu0 0.0
    %188 = vmatpush2.xpose.msra.mxu0 0.0
    %189 = vmatprep.subr.mxu0 0.0
    %190 = vmatpush2.xpose.msra.mxu0 0.0
    %191 = vmatprep.subr.mxu0 0.0
    %192 = vmatpush2.xpose.msra.mxu0 0.0
    %193 = vmatprep.subr.mxu0 0.0
    %194 = vmatpush2.xpose.msra.mxu0 0.0
    %195 = vmatprep.mubr.f32.mxu0 0.0
    %196 = vmatmul.mubr.f32.gmra.mxu0 %v75
    %v197 = vpop.f32.mrf.mxu0
    %v198 = vadd.f32 0.0, %v197
    %v199 = vpop.f32.mrf.mxu0
    %200 = vmatprep.mubr.f32.mxu0 0.0
    %201 = vmatmul.mubr.f32.gmra.mxu0 %v78
    %v202 = vpop.f32.mrf.mxu0
    %v203 = vadd.f32 0.0, %v202
    %v204 = vpop.f32.mrf.mxu0
    %205 = vmatprep.mubr.f32.mxu0 0.0
    %206 = vmatmul.mubr.f32.gmra.mxu0 %v81
    %v207 = vpop.f32.mrf.mxu0
    %v208 = vadd.f32 0.0, %v207
    %v209 = vpop.f32.mrf.mxu0
    %210 = vdwg.mxu0
    %v211 = vlaneseq
    %v212 = vand.u32 %v211, 127
    %vm213 = vcmp.lt.s32.totalorder %v212, 64
    %v214 = vsel %vm70, 1, 0
    %v215 = vsel %vm71, 1, 0
    %v216 = vsel %vm72, 1, 0
    %vm217 = vcmp.eq.s32.totalorder %v214, 1
    %vm218 = vcmp.eq.s32.totalorder %v215, 1
    %vm219 = vcmp.eq.s32.totalorder %v216, 1
    %vm220 = vmxor %vm213, %vm217
    %vm221 = vmxor %vm213, %vm218
    %vm222 = vmxor %vm213, %vm219
    %vm223 = vmxor %vm220, 1
    %vm224 = vmxor %vm221, 1
    %vm225 = vmxor %vm222, 1
    %v226 = vsel %vm223, %v198, 0.0
    %v227 = vsel %vm224, %v203, 0.0
    %v228 = vsel %vm225, %v208, 0.0
    %229 = vset.pattern.permute.xlu0 0
    %230 = vperm.xlu0 %229, %v60
    %v231 = vpop.permute.xlu0 %230
    %232 = vset.pattern.permute.xlu0 0
    %233 = vperm.xlu0 %232, %v61
    %v234 = vpop.permute.xlu0 %233
    %235 = vset.pattern.permute.xlu0 0
    %236 = vperm.xlu0 %235, %v62
    %v237 = vpop.permute.xlu0 %236
    %vm238 = vcmp.eq.s32.totalorder %v212, %v231
    %vm239 = vcmp.eq.s32.totalorder %v212, %v234
    %vm240 = vcmp.eq.s32.totalorder %v212, %v237
    %v241 = vsel %vm238, 1, 0
    %v242 = vsel %vm239, 1, 0
    %v243 = vsel %vm240, 1, 0
    %v244 = vcvt.s32.f32 %v241
    %v245 = vcvt.s32.f32 %v242
    %v246 = vcvt.s32.f32 %v243
    %v247 = vadd.s32 %v63, 16
    %v248 = vadd.s32 %v64, 16
    %v249 = vadd.s32 %v65, 16
    %250 = vset.pattern.permute.xlu0 0
    %251 = vperm.xlu0 %250, %v247
    %v252 = vpop.permute.xlu0 %251
    %253 = vset.pattern.permute.xlu0 0
    %254 = vperm.xlu0 %253, %v248
    %v255 = vpop.permute.xlu0 %254
    %256 = vset.pattern.permute.xlu0 0
    %257 = vperm.xlu0 %256, %v249
    %v258 = vpop.permute.xlu0 %257
    %vm259 = vcmp.eq.s32.totalorder %v212, %v252
    %vm260 = vcmp.eq.s32.totalorder %v212, %v255
    %vm261 = vcmp.eq.s32.totalorder %v212, %v258
    %v262 = vsel %vm259, 1, 0
    %v263 = vsel %vm260, 1, 0
    %v264 = vsel %vm261, 1, 0
    %v265 = vcvt.s32.f32 %v262
    %v266 = vcvt.s32.f32 %v263
    %v267 = vcvt.s32.f32 %v264
    %v268 = vadd.f32 %v244, %v265
    %v269 = vadd.f32 %v245, %v266
    %v270 = vadd.f32 %v246, %v267
    %vm271 = vcmask 195584
    %v273 = vsel %vm271, %v268, 0
    %v276 = vsel %vm271, %v269, 0
    %v279 = vsel %vm271, %v270, 0
    %281 = vmatprep.subr.mxu0 0.0
    %282 = vmatpush1.msra.mxu0 0.0
    %283 = vmatprep.subr.mxu0 0.0
    %284 = vmatpush1.msra.mxu0 0.0
    %285 = vmatprep.subr.mxu0 0.0
    %286 = vmatpush1.msra.mxu0 0.0
    %287 = vmatprep.subr.mxu0 0.0
    %288 = vmatpush1.msra.mxu0 0.0
    %289 = vmatprep.subr.mxu0 0.0
    %290 = vmatpush1.msra.mxu0 0.0
    %291 = vmatprep.subr.mxu0 0.0
    %292 = vmatpush1.msra.mxu0 0.0
    %293 = vmatprep.subr.mxu0 0.0
    %294 = vmatpush1.msra.mxu0 0.0
    %295 = vmatprep.subr.mxu0 0.0
    %296 = vmatpush1.msra.mxu0 0.0
    %297 = vmatprep.subr.mxu0 0.0
    %298 = vmatpush1.msra.mxu0 0.0
    %299 = vmatprep.subr.mxu0 0.0
    %300 = vmatpush1.msra.mxu0 0.0
    %301 = vmatprep.subr.mxu0 0.0
    %302 = vmatpush1.msra.mxu0 0.0
    %303 = vmatprep.subr.mxu0 0.0
    %304 = vmatpush1.msra.mxu0 0.0
    %305 = vmatprep.subr.mxu0 0.0
    %306 = vmatpush1.msra.mxu0 0.0
    %307 = vmatprep.subr.mxu0 0.0
    %308 = vmatpush1.msra.mxu0 %v228
    %309 = vmatprep.subr.mxu0 0.0
    %310 = vmatpush1.msra.mxu0 %v227
    %311 = vmatprep.subr.mxu0 0.0
    %312 = vmatpush1.msra.mxu0 %v226
    %313 = vmatprep.subr.mxu0 0.0
    %314 = vmatpush2.msra.mxu0 0.0
    %315 = vmatprep.subr.mxu0 0.0
    %316 = vmatpush2.msra.mxu0 0.0
    %317 = vmatprep.subr.mxu0 0.0
    %318 = vmatpush2.msra.mxu0 0.0
    %319 = vmatprep.subr.mxu0 0.0
    %320 = vmatpush2.msra.mxu0 0.0
    %321 = vmatprep.subr.mxu0 0.0
    %322 = vmatpush2.msra.mxu0 0.0
    %323 = vmatprep.subr.mxu0 0.0
    %324 = vmatpush2.msra.mxu0 0.0
    %325 = vmatprep.subr.mxu0 0.0
    %326 = vmatpush2.msra.mxu0 0.0
    %327 = vmatprep.subr.mxu0 0.0
    %328 = vmatpush2.msra.mxu0 0.0
    %329 = vmatprep.subr.mxu0 0.0
    %330 = vmatpush2.msra.mxu0 0.0
    %331 = vmatprep.subr.mxu0 0.0
    %332 = vmatpush2.msra.mxu0 0.0
    %333 = vmatprep.subr.mxu0 0.0
    %334 = vmatpush2.msra.mxu0 0.0
    %335 = vmatprep.subr.mxu0 0.0
    %336 = vmatpush2.msra.mxu0 0.0
    %337 = vmatprep.subr.mxu0 0.0
    %338 = vmatpush2.msra.mxu0 0.0
    %339 = vmatprep.subr.mxu0 0.0
    %340 = vmatpush2.msra.mxu0 0.0
    %341 = vmatprep.subr.mxu0 0.0
    %342 = vmatpush2.msra.mxu0 0.0
    %343 = vmatprep.subr.mxu0 0.0
    %344 = vmatpush2.msra.mxu0 0.0
    %345 = vmatprep.mubr.f32.mxu0 0.0
    %346 = vmatmul.mubr.f32.gmra.mxu0 %v273
    %v347 = vpop.f32.mrf.mxu0
    %v348 = vadd.f32 0.0, %v347
    %v349 = vpop.f32.mrf.mxu0
    %350 = vmatprep.mubr.f32.mxu0 0.0
    %351 = vmatmul.mubr.f32.gmra.mxu0 %v276
    %v352 = vpop.f32.mrf.mxu0
    %v353 = vadd.f32 0.0, %v352
    %v354 = vpop.f32.mrf.mxu0
    %355 = vmatprep.mubr.f32.mxu0 0.0
    %356 = vmatmul.mubr.f32.gmra.mxu0 %v279
    %v357 = vpop.f32.mrf.mxu0
    %v358 = vadd.f32 0.0, %v357
    %v359 = vpop.f32.mrf.mxu0
    %360 = vdwg.mxu0
    %364 = vrot.lane.b32.xlu0 %v348, 64
    %v365 = vpop.permute.xlu0 %364
    %366 = vrot.lane.b32.xlu0 %v353, 64
    %v367 = vpop.permute.xlu0 %366
    %368 = vrot.lane.b32.xlu0 %v358, 64
    %v369 = vpop.permute.xlu0 %368
    %v373 = vmul.f32 %v348, %v365
    %v374 = vmul.f32 %v353, %v367
    %v375 = vmul.f32 %v358, %v369
    %v376 = vsel %vm73, %v373, 0.0
    %377 = vadd.xlane.f32.xlu0 %v376
    %v378 = vpop.xlane.xlu0 %377
    %v379 = vsel %vm73, %v374, 0.0
    %380 = vadd.xlane.f32.xlu0 %v379
    %v381 = vpop.xlane.xlu0 %380
    %v382 = vsel %vm73, %v375, 0.0
    %383 = vadd.xlane.f32.xlu0 %v382
    %v384 = vpop.xlane.xlu0 %383
    %vm385 = vcmp.ne.f32.partialorder %v268, 0.0
    %vm386 = vcmp.ne.f32.partialorder %v269, 0.0
    %vm387 = vcmp.ne.f32.partialorder %v270, 0.0
    %v388 = vsel %vm385, %v378, -1e+30
    %v389 = vsel %vm386, %v381, -1e+30
    %v390 = vsel %vm387, %v384, -1e+30
    %v391 = vsel %vm271, %v388, -inf
    %v392 = vsel %vm271, %v389, -inf
    %v393 = vsel %vm271, %v390, -inf
    %v394 = vmax.f32 %v391, %v392
    %v395 = vmax.f32 %v394, %v393
    %v396 = vrot.slane %v395, 4
    %v397 = vmax.f32 %v395, %v396
    %v398 = vrot.slane %v397, 2
    %v399 = vmax.f32 %v397, %v398
    %v400 = vrot.slane %v399, 1
    %v401 = vmax.f32 %v399, %v400
    %v402 = vmul.f32 %v244, %v401
    %v403 = vmul.f32 %v245, %v401
    %v404 = vmul.f32 %v246, %v401
    %v405 = vsel %vm271, %v402, 0.0
    %406 = vadd.xlane.f32.xlu0 %v405
    %v407 = vpop.xlane.xlu0 %406
    %v408 = vsel %vm271, %v403, 0.0
    %409 = vadd.xlane.f32.xlu0 %v408
    %v410 = vpop.xlane.xlu0 %409
    %v411 = vsel %vm271, %v404, 0.0
    %412 = vadd.xlane.f32.xlu0 %v411
    %v413 = vpop.xlane.xlu0 %412
    %v414 = vmul.f32 %v265, %v401
    %v415 = vmul.f32 %v266, %v401
    %v416 = vmul.f32 %v267, %v401
    %v417 = vsel %vm271, %v414, 0.0
    %418 = vadd.xlane.f32.xlu0 %v417
    %v419 = vpop.xlane.xlu0 %418
    %v420 = vsel %vm271, %v415, 0.0
    %421 = vadd.xlane.f32.xlu0 %v420
    %v422 = vpop.xlane.xlu0 %421
    %v423 = vsel %vm271, %v416, 0.0
    %424 = vadd.xlane.f32.xlu0 %v423
    %v425 = vpop.xlane.xlu0 %424
    %v426 = vsub.f32 %v378, %v407
    %v427 = vsub.f32 %v381, %v410
    %v428 = vsub.f32 %v384, %v413
    %v429 = vmul.f32 %v426, 0.17677669
    %v430 = vmul.f32 %v427, 0.17677669
    %v431 = vmul.f32 %v428, 0.17677669
    %v432 = vmul.f32 %v429, 1.442695
    %v433 = vpow.pop %v432
    %v434 = vmul.f32 %v430, 1.442695
    %v435 = vpow.pop %v434
    %v436 = vmul.f32 %v431, 1.442695
    %v437 = vpow.pop %v436
    %v438 = vsub.f32 %v378, %v419
    %v439 = vsub.f32 %v381, %v422
    %v440 = vsub.f32 %v384, %v425
    %v441 = vmul.f32 %v438, 0.17677669
    %v442 = vmul.f32 %v439, 0.17677669
    %v443 = vmul.f32 %v440, 0.17677669
    %v444 = vmul.f32 %v441, 1.442695
    %v445 = vpow.pop %v444
    %v446 = vmul.f32 %v442, 1.442695
    %v447 = vpow.pop %v446
    %v448 = vmul.f32 %v443, 1.442695
    %v449 = vpow.pop %v448
    %vm450 = vcmp.eq.s32.totalorder %v212, 0
    %v451 = vmul.f32 %v433, %v348
    %v452 = vmul.f32 %v435, %v353
    %v453 = vmul.f32 %v437, %v358
    %v454 = vsel %vm450, %v433, %v451
    %v455 = vsel %vm450, %v435, %v452
    %v456 = vsel %vm450, %v437, %v453
    %v457 = vmul.f32 %v445, %v348
    %v458 = vmul.f32 %v447, %v353
    %v459 = vmul.f32 %v449, %v358
    %v460 = vsel %vm450, %v445, %v457
    %v461 = vsel %vm450, %v447, %v458
    %v462 = vsel %vm450, %v449, %v459
    %463 = vxpose.xlu0.b32.start [1/16] %v244, 128
    %464 = vxpose.xlu0.b32.cont [2/16] %v245, 128
    %465 = vxpose.xlu0.b32.cont [3/16] %v246, 128
    %466 = vxpose.xlu0.b32.cont [4/16] 0.0, 128
    %467 = vxpose.xlu0.b32.cont [5/16] 0.0, 128
    %468 = vxpose.xlu0.b32.cont [6/16] 0.0, 128
    %469 = vxpose.xlu0.b32.cont [7/16] 0.0, 128
    %470 = vxpose.xlu0.b32.cont [8/16] 0.0, 128
    %471 = vxpose.xlu0.b32.cont [9/16] 0.0, 128
    %472 = vxpose.xlu0.b32.cont [10/16] 0.0, 128
    %473 = vxpose.xlu0.b32.cont [11/16] 0.0, 128
    %474 = vxpose.xlu0.b32.cont [12/16] 0.0, 128
    %475 = vxpose.xlu0.b32.cont [13/16] 0.0, 128
    %476 = vxpose.xlu0.b32.cont [14/16] 0.0, 128
    %477 = vxpose.xlu0.b32.cont [15/16] 0.0, 128
    %478 = vxpose.xlu0.b32.end [16/16] 0.0, 128
    %v479 = vpop.trf.xlu0
    %v480 = vpop.trf.xlu0
    %v481 = vpop.trf.xlu0
    %v482 = vpop.trf.xlu0
    %v483 = vpop.trf.xlu0
    %v484 = vpop.trf.xlu0
    %v485 = vpop.trf.xlu0
    %v486 = vpop.trf.xlu0
    %v487 = vpop.trf.xlu0
    %v488 = vpop.trf.xlu0
    %v489 = vpop.trf.xlu0
    %v490 = vpop.trf.xlu0
    %v491 = vpop.trf.xlu0
    %v492 = vpop.trf.xlu0
    %v493 = vpop.trf.xlu0
    %v494 = vpop.trf.xlu0
    %v496 = vsel %vm271, %v479, 0
    %v499 = vsel %vm271, %v480, 0
    %v502 = vsel %vm271, %v481, 0
    %504 = vmatprep.subr.mxu0 0.0
    %505 = vmatpush1.msra.mxu0 0.0
    %506 = vmatprep.subr.mxu0 0.0
    %507 = vmatpush1.msra.mxu0 0.0
    %508 = vmatprep.subr.mxu0 0.0
    %509 = vmatpush1.msra.mxu0 0.0
    %510 = vmatprep.subr.mxu0 0.0
    %511 = vmatpush1.msra.mxu0 0.0
    %512 = vmatprep.subr.mxu0 0.0
    %513 = vmatpush1.msra.mxu0 0.0
    %514 = vmatprep.subr.mxu0 0.0
    %515 = vmatpush1.msra.mxu0 0.0
    %516 = vmatprep.subr.mxu0 0.0
    %517 = vmatpush1.msra.mxu0 0.0
    %518 = vmatprep.subr.mxu0 0.0
    %519 = vmatpush1.msra.mxu0 0.0
    %520 = vmatprep.subr.mxu0 0.0
    %521 = vmatpush1.msra.mxu0 0.0
    %522 = vmatprep.subr.mxu0 0.0
    %523 = vmatpush1.msra.mxu0 0.0
    %524 = vmatprep.subr.mxu0 0.0
    %525 = vmatpush1.msra.mxu0 0.0
    %526 = vmatprep.subr.mxu0 0.0
    %527 = vmatpush1.msra.mxu0 0.0
    %528 = vmatprep.subr.mxu0 0.0
    %529 = vmatpush1.msra.mxu0 0.0
    %530 = vmatprep.subr.mxu0 0.0
    %531 = vmatpush1.msra.mxu0 %v456
    %532 = vmatprep.subr.mxu0 0.0
    %533 = vmatpush1.msra.mxu0 %v455
    %534 = vmatprep.subr.mxu0 0.0
    %535 = vmatpush1.msra.mxu0 %v454
    %536 = vmatprep.subr.mxu0 0.0
    %537 = vmatpush2.msra.mxu0 0.0
    %538 = vmatprep.subr.mxu0 0.0
    %539 = vmatpush2.msra.mxu0 0.0
    %540 = vmatprep.subr.mxu0 0.0
    %541 = vmatpush2.msra.mxu0 0.0
    %542 = vmatprep.subr.mxu0 0.0
    %543 = vmatpush2.msra.mxu0 0.0
    %544 = vmatprep.subr.mxu0 0.0
    %545 = vmatpush2.msra.mxu0 0.0
    %546 = vmatprep.subr.mxu0 0.0
    %547 = vmatpush2.msra.mxu0 0.0
    %548 = vmatprep.subr.mxu0 0.0
    %549 = vmatpush2.msra.mxu0 0.0
    %550 = vmatprep.subr.mxu0 0.0
    %551 = vmatpush2.msra.mxu0 0.0
    %552 = vmatprep.subr.mxu0 0.0
    %553 = vmatpush2.msra.mxu0 0.0
    %554 = vmatprep.subr.mxu0 0.0
    %555 = vmatpush2.msra.mxu0 0.0
    %556 = vmatprep.subr.mxu0 0.0
    %557 = vmatpush2.msra.mxu0 0.0
    %558 = vmatprep.subr.mxu0 0.0
    %559 = vmatpush2.msra.mxu0 0.0
    %560 = vmatprep.subr.mxu0 0.0
    %561 = vmatpush2.msra.mxu0 0.0
    %562 = vmatprep.subr.mxu0 0.0
    %563 = vmatpush2.msra.mxu0 0.0
    %564 = vmatprep.subr.mxu0 0.0
    %565 = vmatpush2.msra.mxu0 0.0
    %566 = vmatprep.subr.mxu0 0.0
    %567 = vmatpush2.msra.mxu0 0.0
    %568 = vmatprep.mubr.f32.mxu0 0.0
    %569 = vmatmul.mubr.f32.gmra.mxu0 %v496
    %v570 = vpop.f32.mrf.mxu0
    %v571 = vadd.f32 0.0, %v570
    %v572 = vpop.f32.mrf.mxu0
    %573 = vmatprep.mubr.f32.mxu0 0.0
    %574 = vmatmul.mubr.f32.gmra.mxu0 %v499
    %v575 = vpop.f32.mrf.mxu0
    %v576 = vadd.f32 0.0, %v575
    %v577 = vpop.f32.mrf.mxu0
    %578 = vmatprep.mubr.f32.mxu0 0.0
    %579 = vmatmul.mubr.f32.gmra.mxu0 %v502
    %v580 = vpop.f32.mrf.mxu0
    %v581 = vadd.f32 0.0, %v580
    %v582 = vpop.f32.mrf.mxu0
    %583 = vdwg.mxu0
    %584 = vxpose.xlu0.b32.start [1/16] %v265, 128
    %585 = vxpose.xlu0.b32.cont [2/16] %v266, 128
    %586 = vxpose.xlu0.b32.cont [3/16] %v267, 128
    %587 = vxpose.xlu0.b32.cont [4/16] 0.0, 128
    %588 = vxpose.xlu0.b32.cont [5/16] 0.0, 128
    %589 = vxpose.xlu0.b32.cont [6/16] 0.0, 128
    %590 = vxpose.xlu0.b32.cont [7/16] 0.0, 128
    %591 = vxpose.xlu0.b32.cont [8/16] 0.0, 128
    %592 = vxpose.xlu0.b32.cont [9/16] 0.0, 128
    %593 = vxpose.xlu0.b32.cont [10/16] 0.0, 128
    %594 = vxpose.xlu0.b32.cont [11/16] 0.0, 128
    %595 = vxpose.xlu0.b32.cont [12/16] 0.0, 128
    %596 = vxpose.xlu0.b32.cont [13/16] 0.0, 128
    %597 = vxpose.xlu0.b32.cont [14/16] 0.0, 128
    %598 = vxpose.xlu0.b32.cont [15/16] 0.0, 128
    %599 = vxpose.xlu0.b32.end [16/16] 0.0, 128
    %v600 = vpop.trf.xlu0
    %v601 = vpop.trf.xlu0
    %v602 = vpop.trf.xlu0
    %v603 = vpop.trf.xlu0
    %v604 = vpop.trf.xlu0
    %v605 = vpop.trf.xlu0
    %v606 = vpop.trf.xlu0
    %v607 = vpop.trf.xlu0
    %v608 = vpop.trf.xlu0
    %v609 = vpop.trf.xlu0
    %v610 = vpop.trf.xlu0
    %v611 = vpop.trf.xlu0
    %v612 = vpop.trf.xlu0
    %v613 = vpop.trf.xlu0
    %v614 = vpop.trf.xlu0
    %v615 = vpop.trf.xlu0
    %v617 = vsel %vm271, %v600, 0
    %v620 = vsel %vm271, %v601, 0
    %v623 = vsel %vm271, %v602, 0
    %625 = vmatprep.subr.mxu0 0.0
    %626 = vmatpush1.msra.mxu0 0.0
    %627 = vmatprep.subr.mxu0 0.0
    %628 = vmatpush1.msra.mxu0 0.0
    %629 = vmatprep.subr.mxu0 0.0
    %630 = vmatpush1.msra.mxu0 0.0
    %631 = vmatprep.subr.mxu0 0.0
    %632 = vmatpush1.msra.mxu0 0.0
    %633 = vmatprep.subr.mxu0 0.0
    %634 = vmatpush1.msra.mxu0 0.0
    %635 = vmatprep.subr.mxu0 0.0
    %636 = vmatpush1.msra.mxu0 0.0
    %637 = vmatprep.subr.mxu0 0.0
    %638 = vmatpush1.msra.mxu0 0.0
    %639 = vmatprep.subr.mxu0 0.0
    %640 = vmatpush1.msra.mxu0 0.0
    %641 = vmatprep.subr.mxu0 0.0
    %642 = vmatpush1.msra.mxu0 0.0
    %643 = vmatprep.subr.mxu0 0.0
    %644 = vmatpush1.msra.mxu0 0.0
    %645 = vmatprep.subr.mxu0 0.0
    %646 = vmatpush1.msra.mxu0 0.0
    %647 = vmatprep.subr.mxu0 0.0
    %648 = vmatpush1.msra.mxu0 0.0
    %649 = vmatprep.subr.mxu0 0.0
    %650 = vmatpush1.msra.mxu0 0.0
    %651 = vmatprep.subr.mxu0 0.0
    %652 = vmatpush1.msra.mxu0 %v462
    %653 = vmatprep.subr.mxu0 0.0
    %654 = vmatpush1.msra.mxu0 %v461
    %655 = vmatprep.subr.mxu0 0.0
    %656 = vmatpush1.msra.mxu0 %v460
    %657 = vmatprep.subr.mxu0 0.0
    %658 = vmatpush2.msra.mxu0 0.0
    %659 = vmatprep.subr.mxu0 0.0
    %660 = vmatpush2.msra.mxu0 0.0
    %661 = vmatprep.subr.mxu0 0.0
    %662 = vmatpush2.msra.mxu0 0.0
    %663 = vmatprep.subr.mxu0 0.0
    %664 = vmatpush2.msra.mxu0 0.0
    %665 = vmatprep.subr.mxu0 0.0
    %666 = vmatpush2.msra.mxu0 0.0
    %667 = vmatprep.subr.mxu0 0.0
    %668 = vmatpush2.msra.mxu0 0.0
    %669 = vmatprep.subr.mxu0 0.0
    %670 = vmatpush2.msra.mxu0 0.0
    %671 = vmatprep.subr.mxu0 0.0
    %672 = vmatpush2.msra.mxu0 0.0
    %673 = vmatprep.subr.mxu0 0.0
    %674 = vmatpush2.msra.mxu0 0.0
    %675 = vmatprep.subr.mxu0 0.0
    %676 = vmatpush2.msra.mxu0 0.0
    %677 = vmatprep.subr.mxu0 0.0
    %678 = vmatpush2.msra.mxu0 0.0
    %679 = vmatprep.subr.mxu0 0.0
    %680 = vmatpush2.msra.mxu0 0.0
    %681 = vmatprep.subr.mxu0 0.0
    %682 = vmatpush2.msra.mxu0 0.0
    %683 = vmatprep.subr.mxu0 0.0
    %684 = vmatpush2.msra.mxu0 0.0
    %685 = vmatprep.subr.mxu0 0.0
    %686 = vmatpush2.msra.mxu0 0.0
    %687 = vmatprep.subr.mxu0 0.0
    %688 = vmatpush2.msra.mxu0 0.0
    %689 = vmatprep.mubr.f32.mxu0 0.0
    %690 = vmatmul.mubr.f32.gmra.mxu0 %v617
    %v691 = vpop.f32.mrf.mxu0
    %v692 = vadd.f32 0.0, %v691
    %v693 = vpop.f32.mrf.mxu0
    %694 = vmatprep.mubr.f32.mxu0 0.0
    %695 = vmatmul.mubr.f32.gmra.mxu0 %v620
    %v696 = vpop.f32.mrf.mxu0
    %v697 = vadd.f32 0.0, %v696
    %v698 = vpop.f32.mrf.mxu0
    %699 = vmatprep.mubr.f32.mxu0 0.0
    %700 = vmatmul.mubr.f32.gmra.mxu0 %v623
    %v701 = vpop.f32.mrf.mxu0
    %v702 = vadd.f32 0.0, %v701
    %v703 = vpop.f32.mrf.mxu0
    %704 = vdwg.mxu0
    %708 = vrot.lane.b32.xlu0 %v692, 64
    %v709 = vpop.permute.xlu0 %708
    %710 = vrot.lane.b32.xlu0 %v697, 64
    %v711 = vpop.permute.xlu0 %710
    %712 = vrot.lane.b32.xlu0 %v702, 64
    %v713 = vpop.permute.xlu0 %712
    %v717 = vsel %vm217, %v571, %v709
    %v718 = vsel %vm218, %v576, %v711
    %v719 = vsel %vm219, %v581, %v713
    %v720 = vsel %vm70, %v571, %v692
    %v721 = vsel %vm71, %v576, %v697
    %v722 = vsel %vm72, %v581, %v702
    %v723 = vadd.f32 %v720, 1e-08
    %v724 = vadd.f32 %v721, 1e-08
    %v725 = vadd.f32 %v722, 1e-08
    %v726 = vrcp.pop %v723
    %v727 = vrcp.pop %v724
    %v728 = vrcp.pop %v725
    %730 = vset.pattern.permute.xlu0 0
    %731 = vperm.xlu0 %730, %v726
    %v732 = vpop.permute.xlu0 %731
    %735 = vset.pattern.permute.xlu0 0
    %736 = vperm.xlu0 %735, %v727
    %v737 = vpop.permute.xlu0 %736
    %740 = vset.pattern.permute.xlu0 0
    %741 = vperm.xlu0 %740, %v728
    %v742 = vpop.permute.xlu0 %741
    %v744 = vmul.f32 %v717, %v732
    %v745 = vmul.f32 %v718, %v737
    %v746 = vmul.f32 %v719, %v742
    %v748 = vlaneseq
    %v749 = vshrl.u32 %v748, 7
    %v750 = vsub.s32 0, %v749
    %v751 = vrot.slane %v59, %v750
    %756 = vrot.lane.b32.xlu0 %v744, 32
    %v757 = vpop.permute.xlu0 %756
    %758 = vrot.lane.b32.xlu0 %v745, 32
    %v759 = vpop.permute.xlu0 %758
    %760 = vrot.lane.b32.xlu0 %v746, 32
    %v761 = vpop.permute.xlu0 %760
    %v762 = vsel %vm73, %v757, 0
    %v764 = vsel %vm73, %v759, 0
    %v766 = vsel %vm73, %v761, 0
    %v769 = vsel %vm73, %v43, 0
    %v772 = vsel %vm73, %v44, 0
    %v775 = vsel %vm73, %v45, 0
    %v778 = vsel %vm73, %v46, 0
    %v781 = vsel %vm73, %v47, 0
    %v784 = vsel %vm73, %v48, 0
    %v787 = vsel %vm73, %v49, 0
    %v790 = vsel %vm73, %v50, 0
    %v793 = vsel %vm73, %v51, 0
    %v796 = vsel %vm73, %v52, 0
    %v799 = vsel %vm73, %v53, 0
    %v802 = vsel %vm73, %v54, 0
    %v805 = vsel %vm73, %v55, 0
    %v808 = vsel %vm73, %v56, 0
    %v811 = vsel %vm73, %v57, 0
    %v814 = vsel %vm73, %v58, 0
    %816 = vmatprep.subr.mxu0 0.0
    %817 = vmatpush1.xpose.msra.mxu0 %v814
    %818 = vmatprep.subr.mxu0 0.0
    %819 = vmatpush1.xpose.msra.mxu0 %v811
    %820 = vmatprep.subr.mxu0 0.0
    %821 = vmatpush1.xpose.msra.mxu0 %v808
    %822 = vmatprep.subr.mxu0 0.0
    %823 = vmatpush1.xpose.msra.mxu0 %v805
    %824 = vmatprep.subr.mxu0 0.0
    %825 = vmatpush1.xpose.msra.mxu0 %v802
    %826 = vmatprep.subr.mxu0 0.0
    %827 = vmatpush1.xpose.msra.mxu0 %v799
    %828 = vmatprep.subr.mxu0 0.0
    %829 = vmatpush1.xpose.msra.mxu0 %v796
    %830 = vmatprep.subr.mxu0 0.0
    %831 = vmatpush1.xpose.msra.mxu0 %v793
    %832 = vmatprep.subr.mxu0 0.0
    %833 = vmatpush1.xpose.msra.mxu0 %v790
    %834 = vmatprep.subr.mxu0 0.0
    %835 = vmatpush1.xpose.msra.mxu0 %v787
    %836 = vmatprep.subr.mxu0 0.0
    %837 = vmatpush1.xpose.msra.mxu0 %v784
    %838 = vmatprep.subr.mxu0 0.0
    %839 = vmatpush1.xpose.msra.mxu0 %v781
    %840 = vmatprep.subr.mxu0 0.0
    %841 = vmatpush1.xpose.msra.mxu0 %v778
    %842 = vmatprep.subr.mxu0 0.0
    %843 = vmatpush1.xpose.msra.mxu0 %v775
    %844 = vmatprep.subr.mxu0 0.0
    %845 = vmatpush1.xpose.msra.mxu0 %v772
    %846 = vmatprep.subr.mxu0 0.0
    %847 = vmatpush1.xpose.msra.mxu0 %v769
    %848 = vmatprep.subr.mxu0 0.0
    %849 = vmatpush2.xpose.msra.mxu0 0.0
    %850 = vmatprep.subr.mxu0 0.0
    %851 = vmatpush2.xpose.msra.mxu0 0.0
    %852 = vmatprep.subr.mxu0 0.0
    %853 = vmatpush2.xpose.msra.mxu0 0.0
    %854 = vmatprep.subr.mxu0 0.0
    %855 = vmatpush2.xpose.msra.mxu0 0.0
    %856 = vmatprep.subr.mxu0 0.0
    %857 = vmatpush2.xpose.msra.mxu0 0.0
    %858 = vmatprep.subr.mxu0 0.0
    %859 = vmatpush2.xpose.msra.mxu0 0.0
    %860 = vmatprep.subr.mxu0 0.0
    %861 = vmatpush2.xpose.msra.mxu0 0.0
    %862 = vmatprep.subr.mxu0 0.0
    %863 = vmatpush2.xpose.msra.mxu0 0.0
    %864 = vmatprep.subr.mxu0 0.0
    %865 = vmatpush2.xpose.msra.mxu0 0.0
    %866 = vmatprep.subr.mxu0 0.0
    %867 = vmatpush2.xpose.msra.mxu0 0.0
    %868 = vmatprep.subr.mxu0 0.0
    %869 = vmatpush2.xpose.msra.mxu0 0.0
    %870 = vmatprep.subr.mxu0 0.0
    %871 = vmatpush2.xpose.msra.mxu0 0.0
    %872 = vmatprep.subr.mxu0 0.0
    %873 = vmatpush2.xpose.msra.mxu0 0.0
    %874 = vmatprep.subr.mxu0 0.0
    %875 = vmatpush2.xpose.msra.mxu0 0.0
    %876 = vmatprep.subr.mxu0 0.0
    %877 = vmatpush2.xpose.msra.mxu0 0.0
    %878 = vmatprep.subr.mxu0 0.0
    %879 = vmatpush2.xpose.msra.mxu0 0.0
    %880 = vmatprep.mubr.f32.mxu0 0.0
    %881 = vmatmul.mubr.f32.gmra.mxu0 %v762
    %v882 = vpop.f32.mrf.mxu0
    %v883 = vadd.f32 %v751, %v882
    %v884 = vpop.f32.mrf.mxu0
    %885 = vmatprep.mubr.f32.mxu0 0.0
    %886 = vmatmul.mubr.f32.gmra.mxu0 %v764
    %v887 = vpop.f32.mrf.mxu0
    %v888 = vadd.f32 %v751, %v887
    %v889 = vpop.f32.mrf.mxu0
    %890 = vmatprep.mubr.f32.mxu0 0.0
    %891 = vmatmul.mubr.f32.gmra.mxu0 %v766
    %v892 = vpop.f32.mrf.mxu0
    %v893 = vadd.f32 %v751, %v892
    %v894 = vpop.f32.mrf.mxu0
    %895 = vdwg.mxu0
    %vm896 = vcmp.gt.f32.partialorder %v883, 0.0
    %vm897 = vcmp.gt.f32.partialorder %v888, 0.0
    %vm898 = vcmp.gt.f32.partialorder %v893, 0.0
    %v899 = vmul.f32 %v883, 0.01
    %v900 = vmul.f32 %v888, 0.01
    %v901 = vmul.f32 %v893, 0.01
    %v902 = vsel %vm896, %v883, %v899
    %v903 = vsel %vm897, %v888, %v900
    %v904 = vsel %vm898, %v893, %v901
    %905 = vst [vmem:[#allocation2] sm:$0xff] %v902
    %906 = vst [vmem:[#allocation2 + $0x8] sm:$0xff] %v903
    %907 = vst [vmem:[#allocation2 + $0x10] sm:$0xff] %v904
    // Predicated region
    $region26: #{tpu_custom_call.1} parent=1 // pred_check
      _
    $region27: #{tpu_custom_call.1} parent=1 // pred_check_branch
      %909 = sbr.rel (0) target = $region29
    $region28: #{tpu_custom_call.1} parent=1 // pred_region
      %s911 = ssub.s32 384, 384
      %912 = vsyncadd [#allocation3], %s911
      %s913 = sshll.u32 [#allocation2], 4
      %s914 = int_to_ptr.vmem [resolvable:$true] %s913
      %919 = dma.vmem_to_hbm [thread:$0]  %s914, 384, %s6, [#allocation3], 128, 128, 8
    $region29: #{tpu_custom_call.1} parent=1 // pred_fallthru
      _
    // Predicated region
    $region30: #{tpu_custom_call.1} parent=1 // pred_check
      _
    $region31: #{tpu_custom_call.1} parent=1 // pred_check_branch
      %921 = sbr.rel (0) target = $region33
    $region32: #{tpu_custom_call.1} parent=1 // pred_region
      %922 = dma.done [#allocation3], 384
    $region33: #{tpu_custom_call.1} parent=1 // pred_fallthru
      _
    %923 = vsyncpa [#allocation3], 1

</llo_original>
